<compile_context>
chip_gen: v7x
topology: tpu7x:2x2x1
jax: 0.10.0
libtpu: 0.0.40
codegen_flags: <defaults>
</compile_context>

<pallas_src>
import jax
import jax.numpy as jnp
from jax.experimental import pallas as pl
from jax.experimental.pallas import tpu as pltpu


def _round_up(a, b):
    return (a + b - 1) // b * b


def _choose_tile(dim, candidates):
    for c in candidates:
        if dim % c == 0:
            return c
    return dim


def _make_fused_kernel(zero_point, max_int, min_int, group_size, tgk, mxu_dtype):
    def kernel(x_ref, w_ref, up_ref, low_ref, b_ref, o_ref, acc_ref):
        k = pl.program_id(2)

        @pl.when(k == 0)
        def _init():
            acc_ref[...] = jnp.zeros_like(acc_ref)

        # ---- fake-quantize (dequantize) this (tn, tk) weight tile, f32 math ----
        w = w_ref[...].astype(jnp.float32)                       # (tn, tk)
        parts = []
        for t in range(tgk):                                     # static unroll (small)
            wg = w[:, t * group_size:(t + 1) * group_size]       # (tn, gs)
            su = up_ref[:, t:t + 1]                              # sigmoid(upbound)
            sl = low_ref[:, t:t + 1]                             # sigmoid(lowbound)
            wmax = jnp.max(wg, axis=-1, keepdims=True) * su      # (tn, 1) XLU reduce
            wmin = jnp.min(wg, axis=-1, keepdims=True) * sl
            if zero_point:
                scales = jnp.maximum(wmax - wmin, 1e-05) / max_int
                inv_scales = 1.0 / scales                        # group-level only
                zeros = jnp.clip(-jnp.round(wmin / scales), min_int, max_int)
                q = jnp.clip(jnp.round(wg * inv_scales) + zeros, min_int, max_int)
                parts.append((q - zeros) * scales)
            else:
                scales = wmax / max_int                          # matches torch: no eps
                inv_scales = 1.0 / scales
                q = jnp.clip(jnp.round(wg * inv_scales), min_int, max_int)
                parts.append(q * scales)
        w_dq = parts[0] if tgk == 1 else jnp.concatenate(parts, axis=-1)
        w_dq = w_dq.astype(mxu_dtype)                            # (tn, tk)

        # ---- MXU: contract the shared K axis directly (no transpose) ----
        acc_ref[...] += jax.lax.dot_general(
            x_ref[...].astype(mxu_dtype), w_dq,
            dimension_numbers=(((1,), (1,)), ((), ())),
            preferred_element_type=jnp.float32)

        # ---- epilogue: bias add + cast only on the last K step ----
        @pl.when(k == pl.num_programs(2) - 1)
        def _finalize():
            o_ref[...] = (acc_ref[...] + b_ref[...].astype(jnp.float32)
                          ).astype(o_ref.dtype)

    return kernel


def fake_linear_forward(x, weight, bias, upbound, lowbound, *,
                        group_size, zero_point=False, w_bit=4,
                        mxu_dtype=jnp.bfloat16):
    """FakeLinear.forward: group-wise fake-quantize `weight`, then x @ w_dq.T + bias.

    Dequantization is fused into the tiled matmul kernel (weight read from HBM once
    per M tile, dequantized in VMEM, fed straight to the MXU).
    """
    orig_shape = x.shape
    in_f = orig_shape[-1]
    out_f, in_f_w = weight.shape
    assert in_f == in_f_w
    assert in_f % group_size == 0, "in_features must be a multiple of group_size"

    if zero_point:
        max_int, min_int = 2 ** w_bit - 1, 0
    else:
        max_int, min_int = 2 ** (w_bit - 1) - 1, -(2 ** (w_bit - 1))

    out_dtype = x.dtype
    x2d = x.reshape(-1, in_f)
    m = x2d.shape[0]

    # --- tile sizes (256/512 multiples preferred for v6e/v7x MXU; 128 ok on v5e) ---
    tm = min(256, _round_up(m, 8))
    mp = _round_up(m, tm)
    if mp != m:
        x2d = jnp.pad(x2d, ((0, mp - m), (0, 0)))
    # MXU operands are bf16 anyway; cast once here so x tiles move at half width
    # and are not re-cast for every output tile j.
    x2d = x2d.astype(mxu_dtype)

    tn = _choose_tile(out_f, (512, 256, 128))
    tk = in_f
    for c in (512, 256, 128):
        if in_f % c == 0 and c % group_size == 0:
            tk = c
            break
    tgk = tk // group_size
    nk = in_f // tk

    # sigmoid on the tiny (num_groups, 1) trainable bounds, rearranged so the K grid
    # index selects the right groups purely via the BlockSpec.
    sig_up = jax.nn.sigmoid(upbound.astype(jnp.float32))
    sig_low = jax.nn.sigmoid(lowbound.astype(jnp.float32))
    up3d = sig_up.reshape(out_f, nk, tgk).transpose(1, 0, 2)     # (nk, out_f, tgk)
    low3d = sig_low.reshape(out_f, nk, tgk).transpose(1, 0, 2)

    if bias is None:
        bias = jnp.zeros((out_f,), dtype=out_dtype)
    b2d = bias.reshape(1, out_f)

    kernel = _make_fused_kernel(zero_point, max_int, min_int, group_size,
                                tgk, mxu_dtype)
    grid = (mp // tm, out_f // tn, nk)

    cost = pl.CostEstimate(
        flops=2 * mp * out_f * in_f,
        transcendentals=0,
        bytes_accessed=(mp * in_f * jnp.dtype(mxu_dtype).itemsize
                        + out_f * in_f * jnp.dtype(weight.dtype).itemsize
                        + mp * out_f * jnp.dtype(out_dtype).itemsize))

    y = pl.pallas_call(
        kernel,
        out_shape=jax.ShapeDtypeStruct((mp, out_f), out_dtype),
        grid_spec=pltpu.PrefetchScalarGridSpec(
            num_scalar_prefetch=0,
            grid=grid,
            in_specs=[
                pl.BlockSpec((tm, tk), lambda i, j, k: (i, k)),            # x (bf16)
                pl.BlockSpec((tn, tk), lambda i, j, k: (j, k)),            # weight (f32)
                pl.BlockSpec((None, tn, tgk), lambda i, j, k: (k, j, 0)),  # sig(up)
                pl.BlockSpec((None, tn, tgk), lambda i, j, k: (k, j, 0)),  # sig(low)
                pl.BlockSpec((1, tn), lambda i, j, k: (0, j)),             # bias
            ],
            out_specs=pl.BlockSpec((tm, tn), lambda i, j, k: (i, j)),
            scratch_shapes=[pltpu.VMEM((tm, tn), jnp.float32)],
        ),
        compiler_params=pltpu.CompilerParams(
            dimension_semantics=("parallel", "parallel", "arbitrary")),
        cost_estimate=cost,
    )(x2d, weight, up3d, low3d, b2d)

    y = y[:m]
    return y.reshape(*orig_shape[:-1], out_f)


def reference_forward(x, weight, bias, upbound, lowbound, *,
                      group_size, zero_point=False, w_bit=4):
    """Pure-JAX f32 reference (mirrors the PyTorch module exactly)."""
    out_f, in_f = weight.shape
    w = weight.reshape(-1, group_size)
    wmin = jnp.min(w, axis=-1, keepdims=True)
    wmax = jnp.max(w, axis=-1, keepdims=True)
    wmax = jax.nn.sigmoid(upbound) * wmax
    wmin = jax.nn.sigmoid(lowbound) * wmin
    if zero_point:
        max_int, min_int = 2 ** w_bit - 1, 0
        scales = jnp.maximum(wmax - wmin, 1e-05) / max_int
        zeros = jnp.clip(-jnp.round(wmin / scales), min_int, max_int)
        w_dq = (jnp.clip(jnp.round(w / scales) + zeros, min_int, max_int)
                - zeros) * scales
    else:
        max_int, min_int = 2 ** (w_bit - 1) - 1, -(2 ** (w_bit - 1))
        scales = wmax / max_int
        w_dq = jnp.clip(jnp.round(w / scales), min_int, max_int) * scales
    w_dq = w_dq.reshape(out_f, in_f)
    return jnp.einsum("...i,oi->...o", x, w_dq) + bias


# TODO(synk): the quantizer's stateful caching of self.scales / self.zeros (and the
# STE detach trick, a backward-pass concept) have no forward-output effect and are
# not reproduced here.

if __name__ == "__main__":
    B, S, IN, OUT = 2, 8, 768, 384
    GROUP_SIZE, W_BIT = 128, 4

    key = jax.random.PRNGKey(0)
    kx, kw, kb, ku, kl = jax.random.split(key, 5)

    x = jax.random.normal(kx, (B, S, IN), dtype=jnp.float32)
    weight = jax.random.normal(kw, (OUT, IN), dtype=jnp.float32) * 0.1
    bias = jax.random.normal(kb, (OUT,), dtype=jnp.float32) * 0.01

    num_groups = OUT * (IN // GROUP_SIZE)
    # Torch inits these to a constant (init_value); randomize so the check is
    # sensitive to any group/bound mis-mapping.
    upbound = jax.random.uniform(ku, (num_groups, 1), jnp.float32, -2.0, 8.0)
    lowbound = jax.random.uniform(kl, (num_groups, 1), jnp.float32, -2.0, 8.0)

    for zero_point in (False, True):
        y = fake_linear_forward(x, weight, bias, upbound, lowbound,
                                group_size=GROUP_SIZE, zero_point=zero_point,
                                w_bit=W_BIT)
        jax.block_until_ready(y)
        y_ref = reference_forward(x, weight, bias, upbound, lowbound,
                                  group_size=GROUP_SIZE, zero_point=zero_point,
                                  w_bit=W_BIT)
        assert y.shape == (B, S, OUT)
        # Tolerance covers bf16 MXU operands vs the pure-f32 reference (~1% rel).
        max_err = float(jnp.max(jnp.abs(y - y_ref)))
        assert jnp.allclose(y, y_ref, atol=0.15, rtol=0.05), (zero_point, max_err)

    print("KERNEL_OK")
</pallas_src>

<mosaic_0001>
module attributes {stable_mosaic.version = 11 : i64} {
  func.func @kernel(%arg0: i32, %arg1: i32, %arg2: i32, %arg3: memref<16x256xbf16, #tpu.memory_space<vmem>>, %arg4: memref<128x256xf32, #tpu.memory_space<vmem>>, %arg5: memref<1x128x2xf32, #tpu.memory_space<vmem>>, %arg6: memref<1x128x2xf32, #tpu.memory_space<vmem>>, %arg7: memref<1x128xf32, #tpu.memory_space<vmem>>, %arg8: memref<16x128xf32, #tpu.memory_space<vmem>>, %arg9: memref<16x128xf32, #tpu.memory_space<vmem>>) attributes {dimension_semantics = [#tpu.dimension_semantics<parallel>, #tpu.dimension_semantics<parallel>, #tpu.dimension_semantics<arbitrary>], iteration_bounds = array<i64: 1, 3, 3>, scalar_prefetch = 0 : i64, scratch_operands = 1 : i64, tpu.core_type = #tpu.core_type<tc>, window_params = [{transform_indices = @transform_0, window_bounds = array<i64: 16, 256>}, {transform_indices = @transform_1, window_bounds = array<i64: 128, 256>}, {transform_indices = @transform_2, window_bounds = array<i64: 1, 128, 2>}, {transform_indices = @transform_3, window_bounds = array<i64: 1, 128, 2>}, {transform_indices = @transform_4, window_bounds = array<i64: 1, 128>}, {transform_indices = @transform_5, window_bounds = array<i64: 16, 128>}]} {
    %c0_i32 = arith.constant 0 : i32
    %0 = arith.cmpi eq, %arg2, %c0_i32 : i32
    %1 = arith.extui %0 : i1 to i32
    %c0_i32_0 = arith.constant 0 : i32
    %2 = arith.cmpi ne, %1, %c0_i32_0 : i32
    scf.if %2 {
      %cst_22 = arith.constant 0.000000e+00 : f32
      %56 = vector.broadcast %cst_22 : f32 to vector<16x128xf32>
      %c0_23 = arith.constant 0 : index
      %c0_24 = arith.constant 0 : index
      %57 = vector.load %arg9[%c0_23, %c0_24] : memref<16x128xf32, #tpu.memory_space<vmem>>, vector<16x128xf32>
      tpu.vector_store %arg9[%c0_23, %c0_24], %56 {strides = array<i32>} : memref<16x128xf32, #tpu.memory_space<vmem>>, vector<16x128xf32>,
    } else {
    }
    %c0 = arith.constant 0 : index
    %c0_1 = arith.constant 0 : index
    %3 = vector.load %arg4[%c0, %c0_1] : memref<128x256xf32, #tpu.memory_space<vmem>>, vector<128x256xf32>
    %4 = vector.extract_strided_slice %3 {offsets = [0, 0], sizes = [128, 128], strides = [1, 1]} : vector<128x256xf32> to vector<128x128xf32>
    %c0_2 = arith.constant 0 : index
    %c0_3 = arith.constant 0 : index
    %c0_4 = arith.constant 0 : index
    %5 = vector.load %arg5[%c0_2, %c0_3, %c0_4] : memref<1x128x2xf32, #tpu.memory_space<vmem>>, vector<1x128x1xf32>
    %6 = vector.shape_cast %5 : vector<1x128x1xf32> to vector<128x1xf32>
    %cst = arith.constant dense<0xFF800000> : vector<128xf32>
    %7 = vector.multi_reduction <maximumf>, %4, %cst [1] : vector<128x128xf32> to vector<128xf32>
    %8 = vector.shape_cast %7 : vector<128xf32> to vector<128x1xf32>
    %9 = arith.mulf %8, %6 : vector<128x1xf32>
    %cst_5 = arith.constant 7.000000e+00 : f32
    %10 = vector.broadcast %cst_5 : f32 to vector<128x1xf32>
    %11 = arith.divf %9, %10 : vector<128x1xf32>
    %cst_6 = arith.constant 1.000000e+00 : f32
    %12 = vector.broadcast %cst_6 : f32 to vector<128x1xf32>
    %13 = arith.divf %12, %11 : vector<128x1xf32>
    %14 = vector.broadcast %13 : vector<128x1xf32> to vector<128x128xf32>
    %15 = arith.mulf %4, %14 : vector<128x128xf32>
    %16 = math.roundeven %15 : vector<128x128xf32>
    %c-8_i32 = arith.constant -8 : i32
    %c7_i32 = arith.constant 7 : i32
    %17 = arith.sitofp %c-8_i32 : i32 to f32
    %18 = vector.broadcast %17 : f32 to vector<128x128xf32>
    %19 = arith.maximumf %18, %16 : vector<128x128xf32>
    %20 = arith.sitofp %c7_i32 : i32 to f32
    %21 = vector.broadcast %20 : f32 to vector<128x128xf32>
    %22 = arith.minimumf %21, %19 : vector<128x128xf32>
    %23 = vector.broadcast %11 : vector<128x1xf32> to vector<128x128xf32>
    %24 = arith.mulf %22, %23 : vector<128x128xf32>
    %25 = vector.extract_strided_slice %3 {offsets = [0, 128], sizes = [128, 128], strides = [1, 1]} : vector<128x256xf32> to vector<128x128xf32>
    %c0_7 = arith.constant 0 : index
    %c0_8 = arith.constant 0 : index
    %c1 = arith.constant 1 : index
    %26 = vector.load %arg5[%c0_7, %c0_8, %c1] : memref<1x128x2xf32, #tpu.memory_space<vmem>>, vector<1x128x1xf32>
    %27 = vector.shape_cast %26 : vector<1x128x1xf32> to vector<128x1xf32>
    %cst_9 = arith.constant dense<0xFF800000> : vector<128xf32>
    %28 = vector.multi_reduction <maximumf>, %25, %cst_9 [1] : vector<128x128xf32> to vector<128xf32>
    %29 = vector.shape_cast %28 : vector<128xf32> to vector<128x1xf32>
    %30 = arith.mulf %29, %27 : vector<128x1xf32>
    %cst_10 = arith.constant 7.000000e+00 : f32
    %31 = vector.broadcast %cst_10 : f32 to vector<128x1xf32>
    %32 = arith.divf %30, %31 : vector<128x1xf32>
    %cst_11 = arith.constant 1.000000e+00 : f32
    %33 = vector.broadcast %cst_11 : f32 to vector<128x1xf32>
    %34 = arith.divf %33, %32 : vector<128x1xf32>
    %35 = vector.broadcast %34 : vector<128x1xf32> to vector<128x128xf32>
    %36 = arith.mulf %25, %35 : vector<128x128xf32>
    %37 = math.roundeven %36 : vector<128x128xf32>
    %c-8_i32_12 = arith.constant -8 : i32
    %c7_i32_13 = arith.constant 7 : i32
    %38 = arith.sitofp %c-8_i32_12 : i32 to f32
    %39 = vector.broadcast %38 : f32 to vector<128x128xf32>
    %40 = arith.maximumf %39, %37 : vector<128x128xf32>
    %41 = arith.sitofp %c7_i32_13 : i32 to f32
    %42 = vector.broadcast %41 : f32 to vector<128x128xf32>
    %43 = arith.minimumf %42, %40 : vector<128x128xf32>
    %44 = vector.broadcast %32 : vector<128x1xf32> to vector<128x128xf32>
    %45 = arith.mulf %43, %44 : vector<128x128xf32>
    %46 = tpu.concatenate %24, %45 in 1 : vector<128x128xf32>, vector<128x128xf32> -> vector<128x256xf32>
    %47 = arith.truncf %46 : vector<128x256xf32> to vector<128x256xbf16>
    %c0_14 = arith.constant 0 : index
    %c0_15 = arith.constant 0 : index
    %48 = vector.load %arg9[%c0_14, %c0_15] : memref<16x128xf32, #tpu.memory_space<vmem>>, vector<16x128xf32>
    %c0_16 = arith.constant 0 : index
    %c0_17 = arith.constant 0 : index
    %49 = vector.load %arg3[%c0_16, %c0_17] : memref<16x256xbf16, #tpu.memory_space<vmem>>, vector<16x256xbf16>
    %cst_18 = arith.constant dense<0.000000e+00> : vector<16x128xf32>
    %50 = tpu.matmul %49, %47, %cst_18 {dimension_numbers = #tpu.dot_dimension_numbers<[1], [1], [0], [0], [0, 0, 1, 0], [], []>} : vector<16x256xbf16>, vector<128x256xbf16>, vector<16x128xf32> -> vector<16x128xf32>
    %51 = arith.addf %48, %50 : vector<16x128xf32>
    %c0_19 = arith.constant 0 : index
    %c0_20 = arith.constant 0 : index
    %52 = vector.load %arg9[%c0_19, %c0_20] : memref<16x128xf32, #tpu.memory_space<vmem>>, vector<16x128xf32>
    tpu.vector_store %arg9[%c0_19, %c0_20], %51 {strides = array<i32>} : memref<16x128xf32, #tpu.memory_space<vmem>>, vector<16x128xf32>,
    %c2_i32 = arith.constant 2 : i32
    %53 = arith.cmpi eq, %arg2, %c2_i32 : i32
    %54 = arith.extui %53 : i1 to i32
    %c0_i32_21 = arith.constant 0 : i32
    %55 = arith.cmpi ne, %54, %c0_i32_21 : i32
    scf.if %55 {
      %c0_22 = arith.constant 0 : index
      %c0_23 = arith.constant 0 : index
      %56 = vector.load %arg9[%c0_22, %c0_23] : memref<16x128xf32, #tpu.memory_space<vmem>>, vector<16x128xf32>
      %c0_24 = arith.constant 0 : index
      %c0_25 = arith.constant 0 : index
      %57 = vector.load %arg7[%c0_24, %c0_25] : memref<1x128xf32, #tpu.memory_space<vmem>>, vector<1x128xf32>
      %58 = vector.broadcast %57 : vector<1x128xf32> to vector<16x128xf32>
      %59 = arith.addf %56, %58 : vector<16x128xf32>
      %c0_26 = arith.constant 0 : index
      %c0_27 = arith.constant 0 : index
      %60 = vector.load %arg8[%c0_26, %c0_27] : memref<16x128xf32, #tpu.memory_space<vmem>>, vector<16x128xf32>
      tpu.vector_store %arg8[%c0_26, %c0_27], %59 {strides = array<i32>} : memref<16x128xf32, #tpu.memory_space<vmem>>, vector<16x128xf32>,
    } else {
    }
    return
  }
  func.func @transform_0(%arg0: i32, %arg1: i32, %arg2: i32) -> (i32, i32) {
    %c0_i32 = arith.constant 0 : i32
    return %arg0, %arg2 : i32, i32
  }
  func.func @transform_1(%arg0: i32, %arg1: i32, %arg2: i32) -> (i32, i32) {
    %c0_i32 = arith.constant 0 : i32
    return %arg1, %arg2 : i32, i32
  }
  func.func @transform_2(%arg0: i32, %arg1: i32, %arg2: i32) -> (i32, i32, i32) {
    %c0_i32 = arith.constant 0 : i32
    %c0_i32_0 = arith.constant 0 : i32
    return %arg2, %arg1, %c0_i32 : i32, i32, i32
  }
  func.func @transform_3(%arg0: i32, %arg1: i32, %arg2: i32) -> (i32, i32, i32) {
    %c0_i32 = arith.constant 0 : i32
    %c0_i32_0 = arith.constant 0 : i32
    return %arg2, %arg1, %c0_i32 : i32, i32, i32
  }
  func.func @transform_4(%arg0: i32, %arg1: i32, %arg2: i32) -> (i32, i32) {
    %c0_i32 = arith.constant 0 : i32
    %c0_i32_0 = arith.constant 0 : i32
    return %c0_i32, %arg1 : i32, i32
  }
  func.func @transform_5(%arg0: i32, %arg1: i32, %arg2: i32) -> (i32, i32) {
    %c0_i32 = arith.constant 0 : i32
    return %arg0, %arg1 : i32, i32
  }
}

</mosaic_0001>

<llo_original>
// kernel: tpu_custom_call.1
$region0: #{tpu_custom_call.1}
  #allocation0 [shape = 'u32[]', space=smem, size = 0x4, offset = 0x4, fixed_abs, tag = 'smem constant byte address 0x4 - core index']
  #allocation1 [shape = 'u32[144,128]{1,0:T(1,128)}', space=vmem, size = 0x12000, scoped, tag = 'internal scratch']
  #allocation2 [shape = 'f32[16,128]{1,0:T(8,128)}', space=vmem, size = 0x2000, scoped, tag = 'scratch operand']
  %s0 = inlined_call_operand.hbm [shape: bf16[16,768], index: 0, kind: input, shape index: {}]
  %s1 = inlined_call_operand.vmem [shape: f32[384,768], index: 1, kind: input, shape index: {}]
  %s2 = inlined_call_operand.vmem [shape: f32[3,384,2], index: 2, kind: input, shape index: {}]
  %s3 = inlined_call_operand.vmem [shape: f32[3,384,2], index: 3, kind: input, shape index: {}]
  %s4 = inlined_call_operand.vmem [shape: f32[1,384], index: 4, kind: input, shape index: {}]
  %s5 = inlined_call_operand.hbm [shape: f32[16,384], index: 5, kind: output, shape index: {}]
  %s6 = sld [smem:[#allocation0]]
  $region88: #{tpu_custom_call.1} parent=0
    _
  %s8 = ssub.s32 1, %s6
  %s9 = scalar_select 0, %s8, %s6
  $region1: #{tpu_custom_call.1} parent=0
    #allocation3 [shape = 'u8[16384]{0}', space=vmem, size = 0x4000, scoped, tag = 'input window, operand 0']
    #allocation4 [shape = 's32[2]{0}', space=sflag, size = 0x8, scoped, tag = 'scoped memory for tpu_custom_call.1']
    #allocation5 [shape = 's32[2]{0}', space=sflag, size = 0x8, scoped, tag = 'scoped memory for tpu_custom_call.1']
    #allocation6 [shape = 'u8[262144]{0}', space=vmem, size = 0x40000, scoped, tag = 'input window, operand 1']
    #allocation7 [shape = 'u8[16384]{0}', space=vmem, size = 0x4000, scoped, tag = 'output window, operand 0']
    %10 = vsyncpa [#allocation4], 0
    %s11 = scalar_lea.sflag [#allocation4], 1
    %12 = vsyncpa %s11, 0
    %13 = vsyncpa [#allocation5], 0
    %s14 = scalar_lea.sflag [#allocation5], 1
    %15 = vsyncpa %s14, 0
    loop: start=0, step=1, limit=11
    $region2: #{tpu_custom_call.1} parent=1 // loop_pre_header
      _
    $region3: #{tpu_custom_call.1} parent=1 // loop_header
      %s17 = sphi 0, %s21
      %p18 = scmp.ge.s32.totalorder %s17, 11
      %s24 = sphi 0, %s43
      %s25 = sphi 0, %s39
      %s26 = sphi 0, %s35
      %s27 = sphi 0, %s24
      %s28 = sphi 0, %s25
      %s29 = sphi 0, %s26
      %s30 = sphi 0, %s27
      %s31 = sphi 0, %s28
      %s32 = sphi 0, %s29
      %s48 = sphi 0, %s50
      %s51 = sphi 0, %s48
      %s52 = sphi 0, %s51
      %s68 = sphi 0, %s52
      %s76 = sphi 0, %s78
      %s79 = sphi 0, %s76
      %s80 = sphi 0, %s79
      %s96 = sphi 0, %s80
      %s104 = sphi 0, %s106
      %s107 = sphi 0, %s104
      %s108 = sphi 0, %s107
      %s124 = sphi 0, %s108
      %s132 = sphi 0, %s134
      %s135 = sphi 0, %s132
      %s136 = sphi 0, %s135
      %s152 = sphi 0, %s136
      %s158 = sphi 0, %s160
      %s161 = sphi 0, %s158
      %s162 = sphi 0, %s161
      %s178 = sphi 0, %s162
      %s186 = sphi 0, %s188
      %s189 = sphi 0, %s186
      %s190 = sphi 0, %s189
      %s206 = sphi 0, %s190
    $region4: #{tpu_custom_call.1} parent=1 // loop_header_branch
      %20 = sbr.rel (%p18) target = $region8
    $region5: #{tpu_custom_call.1} parent=1 // loop_body
      %s22 = ssub.s32 %s17, 1
      %s23 = ssub.s32 %s17, 2
      %s33 = sadd.s32 1, %s26
      %p34 = scmp.ge.s32.totalorder %s33, 3
      %s35 = scalar_select %p34, 0, %s33
      %s36 = sadd.s32 1, %s25
      %s37 = scalar_select %p34, %s36, %s25
      %p38 = scmp.ge.s32.totalorder %s37, 3
      %s39 = scalar_select %p38, 0, %s37
      %s40 = sadd.s32 1, %s24
      %s41 = scalar_select %p38, %s40, %s24
      %p42 = scmp.ge.s32.totalorder %s41, 1
      %s43 = scalar_select %p42, 0, %s41
      %s44 = ssub.s32 %s24, %s43
      %s45 = ssub.s32 %s26, %s35
      %s46 = sor.u32 %s44, %s45
      %p47 = scmp.eq.s32.totalorder %s46, 0
      %s49 = sadd.s32 %s48, 1
      %s50 = scalar_select %p47, %s48, %s49
      %p53 = pneg %p47
      %p54 = scmp.eq.s32.totalorder %s17, 8
      %p55 = por %p53, %p54
      %p56 = scmp.ne.s32.totalorder %s48, %s51
      %p57 = scmp.eq.s32.totalorder %s17, 0
      %p58 = por %p56, %p57
      %p59 = scmp.ne.s32.totalorder %s48, %s51
      %p60 = scmp.eq.s32.totalorder %s22, 8
      %p61 = por %p59, %p60
      %p62 = scmp.ne.s32.totalorder %s51, %s52
      %p63 = scmp.eq.s32.totalorder %s22, 0
      %p64 = por %p62, %p63
      %p65 = scmp.ne.s32.totalorder %s51, %s52
      %p66 = scmp.eq.s32.totalorder %s23, 8
      %p67 = por %p65, %p66
      %p69 = scmp.ne.s32.totalorder %s52, %s68
      %p70 = scmp.eq.s32.totalorder %s23, 0
      %p71 = por %p69, %p70
      %s72 = ssub.s32 %s25, %s39
      %s73 = ssub.s32 %s26, %s35
      %s74 = sor.u32 %s72, %s73
      %p75 = scmp.eq.s32.totalorder %s74, 0
      %s77 = sadd.s32 %s76, 1
      %s78 = scalar_select %p75, %s76, %s77
      %p81 = pneg %p75
      %p82 = scmp.eq.s32.totalorder %s17, 8
      %p83 = por %p81, %p82
      %p84 = scmp.ne.s32.totalorder %s76, %s79
      %p85 = scmp.eq.s32.totalorder %s17, 0
      %p86 = por %p84, %p85
      %p87 = scmp.ne.s32.totalorder %s76, %s79
      %p88 = scmp.eq.s32.totalorder %s22, 8
      %p89 = por %p87, %p88
      %p90 = scmp.ne.s32.totalorder %s79, %s80
      %p91 = scmp.eq.s32.totalorder %s22, 0
      %p92 = por %p90, %p91
      %p93 = scmp.ne.s32.totalorder %s79, %s80
      %p94 = scmp.eq.s32.totalorder %s23, 8
      %p95 = por %p93, %p94
      %p97 = scmp.ne.s32.totalorder %s80, %s96
      %p98 = scmp.eq.s32.totalorder %s23, 0
      %p99 = por %p97, %p98
      %s100 = ssub.s32 %s26, %s35
      %s101 = ssub.s32 %s25, %s39
      %s102 = sor.u32 %s100, %s101
      %p103 = scmp.eq.s32.totalorder %s102, 0
      %s105 = sadd.s32 %s104, 1
      %s106 = scalar_select %p103, %s104, %s105
      %p109 = pneg %p103
      %p110 = scmp.eq.s32.totalorder %s17, 8
      %p111 = por %p109, %p110
      %p112 = scmp.ne.s32.totalorder %s104, %s107
      %p113 = scmp.eq.s32.totalorder %s17, 0
      %p114 = por %p112, %p113
      %p115 = scmp.ne.s32.totalorder %s104, %s107
      %p116 = scmp.eq.s32.totalorder %s22, 8
      %p117 = por %p115, %p116
      %p118 = scmp.ne.s32.totalorder %s107, %s108
      %p119 = scmp.eq.s32.totalorder %s22, 0
      %p120 = por %p118, %p119
      %p121 = scmp.ne.s32.totalorder %s107, %s108
      %p122 = scmp.eq.s32.totalorder %s23, 8
      %p123 = por %p121, %p122
      %p125 = scmp.ne.s32.totalorder %s108, %s124
      %p126 = scmp.eq.s32.totalorder %s23, 0
      %p127 = por %p125, %p126
      %s128 = ssub.s32 %s26, %s35
      %s129 = ssub.s32 %s25, %s39
      %s130 = sor.u32 %s128, %s129
      %p131 = scmp.eq.s32.totalorder %s130, 0
      %s133 = sadd.s32 %s132, 1
      %s134 = scalar_select %p131, %s132, %s133
      %p137 = pneg %p131
      %p138 = scmp.eq.s32.totalorder %s17, 8
      %p139 = por %p137, %p138
      %p140 = scmp.ne.s32.totalorder %s132, %s135
      %p141 = scmp.eq.s32.totalorder %s17, 0
      %p142 = por %p140, %p141
      %p143 = scmp.ne.s32.totalorder %s132, %s135
      %p144 = scmp.eq.s32.totalorder %s22, 8
      %p145 = por %p143, %p144
      %p146 = scmp.ne.s32.totalorder %s135, %s136
      %p147 = scmp.eq.s32.totalorder %s22, 0
      %p148 = por %p146, %p147
      %p149 = scmp.ne.s32.totalorder %s135, %s136
      %p150 = scmp.eq.s32.totalorder %s23, 8
      %p151 = por %p149, %p150
      %p153 = scmp.ne.s32.totalorder %s136, %s152
      %p154 = scmp.eq.s32.totalorder %s23, 0
      %p155 = por %p153, %p154
      %s156 = ssub.s32 %s25, %s39
      %p157 = scmp.eq.s32.totalorder %s156, 0
      %s159 = sadd.s32 %s158, 1
      %s160 = scalar_select %p157, %s158, %s159
      %p163 = pneg %p157
      %p164 = scmp.eq.s32.totalorder %s17, 8
      %p165 = por %p163, %p164
      %p166 = scmp.ne.s32.totalorder %s158, %s161
      %p167 = scmp.eq.s32.totalorder %s17, 0
      %p168 = por %p166, %p167
      %p169 = scmp.ne.s32.totalorder %s158, %s161
      %p170 = scmp.eq.s32.totalorder %s22, 8
      %p171 = por %p169, %p170
      %p172 = scmp.ne.s32.totalorder %s161, %s162
      %p173 = scmp.eq.s32.totalorder %s22, 0
      %p174 = por %p172, %p173
      %p175 = scmp.ne.s32.totalorder %s161, %s162
      %p176 = scmp.eq.s32.totalorder %s23, 8
      %p177 = por %p175, %p176
      %p179 = scmp.ne.s32.totalorder %s162, %s178
      %p180 = scmp.eq.s32.totalorder %s23, 0
      %p181 = por %p179, %p180
      %s182 = ssub.s32 %s24, %s43
      %s183 = ssub.s32 %s25, %s39
      %s184 = sor.u32 %s182, %s183
      %p185 = scmp.eq.s32.totalorder %s184, 0
      %s187 = sadd.s32 %s186, 1
      %s188 = scalar_select %p185, %s186, %s187
      %p191 = pneg %p185
      %p192 = scmp.eq.s32.totalorder %s17, 8
      %p193 = por %p191, %p192
      %p194 = scmp.ne.s32.totalorder %s186, %s189
      %p195 = scmp.eq.s32.totalorder %s17, 0
      %p196 = por %p194, %p195
      %p197 = scmp.ne.s32.totalorder %s186, %s189
      %p198 = scmp.eq.s32.totalorder %s22, 8
      %p199 = por %p197, %p198
      %p200 = scmp.ne.s32.totalorder %s189, %s190
      %p201 = scmp.eq.s32.totalorder %s22, 0
      %p202 = por %p200, %p201
      %p203 = scmp.ne.s32.totalorder %s189, %s190
      %p204 = scmp.eq.s32.totalorder %s23, 8
      %p205 = por %p203, %p204
      %p207 = scmp.ne.s32.totalorder %s190, %s206
      %p208 = scmp.eq.s32.totalorder %s23, 0
      %p209 = por %p207, %p208
      %p210 = scmp.le.s32.totalorder 1, %s17
      %p211 = scmp.lt.s32.totalorder %s17, 10
      %p212 = pnand %p210, %p211
      %p213 = pneg %p212
      // Predicated region
      $region9: #{tpu_custom_call.1} parent=5 // pred_check
        _
      $region10: #{tpu_custom_call.1} parent=5 // pred_check_branch
        %215 = sbr.rel (%p212) target = $region12
      $region11: #{tpu_custom_call.1} parent=5 // pred_region
        %s216 = ssub.s32 %s17, 1
      $region12: #{tpu_custom_call.1} parent=5 // pred_fallthru
        _
      %p217 = scmp.lt.s32.totalorder %s17, 9
      // Predicated region
      $region13: #{tpu_custom_call.1} parent=5 // pred_check
        %p218 = pneg %p217
      $region14: #{tpu_custom_call.1} parent=5 // pred_check_branch
        %220 = sbr.rel (%p218) target = $region16
      $region15: #{tpu_custom_call.1} parent=5 // pred_region
        // Predicated region
        $region17: #{tpu_custom_call.1} parent=15 // pred_check
          %p221 = pneg %p58
        $region18: #{tpu_custom_call.1} parent=15 // pred_check_branch
          %223 = sbr.rel (%p221) target = $region20
        $region19: #{tpu_custom_call.1} parent=15 // pred_region
          %s224 = sand.u32 %s48, 1
          %s225 = scalar_lea.sflag [#allocation4], %s224
          %s226 = sand.u32 %s48, 1
          %s227 = smul.addr %s226, 16
          %s228 = scalar_lea.vmem [#allocation3], %s227
          %s229 = smul.u32 2, %s24
          %s230 = smul.u32 2, %s26
          %s232 = ssub.s32 256, 256
          %233 = vsyncadd %s225, %s232
          %s234 = smul.addr %s229, 6
          %s235 = sadd.s32 %s230, %s234
          %s236 = smul.addr %s235, 64
          %s237 = scalar_lea.hbm %s0, %s236
          %s238 = sshll.u32 %s228, 4
          %s239 = int_to_ptr.vmem [resolvable:$true] %s238
          %244 = dma.hbm_to_vmem [thread:$0]  %s237, 256, %s239, %s225, 384, 128, 8
        $region20: #{tpu_custom_call.1} parent=15 // pred_fallthru
          _
        // Predicated region
        $region21: #{tpu_custom_call.1} parent=15 // pred_check
          %p245 = pneg %p86
        $region22: #{tpu_custom_call.1} parent=15 // pred_check_branch
          %247 = sbr.rel (%p245) target = $region24
        $region23: #{tpu_custom_call.1} parent=15 // pred_region
          %s248 = sand.u32 %s76, 1
          %s249 = sand.u32 %s76, 1
          %s250 = smul.addr %s249, 256
          %s251 = scalar_lea.vmem [#allocation6], %s250
          %s252 = smul.u32 16, %s25
          %s253 = smul.u32 2, %s26
          %s254 = smul.addr %s252, 6
          %s255 = sadd.s32 %s253, %s254
          %s256 = smul.addr %s255, 8
          %s257 = scalar_lea.vmem %s1, %s256
          // Predicated region
          $region25: #{tpu_custom_call.1} parent=23 // pred_check
            _
          $region26: #{tpu_custom_call.1} parent=23 // pred_check_branch
            %259 = sbr.rel (0) target = $region28
          $region27: #{tpu_custom_call.1} parent=23 // pred_region
            // Predicated region
            $region29: #{tpu_custom_call.1} parent=27 // pred_check
              _
            $region30: #{tpu_custom_call.1} parent=27 // pred_check_branch
              %261 = sbr.rel (0) target = $region32
            $region31: #{tpu_custom_call.1} parent=27 // pred_region
              loop: start=0, step=1, limit=1
              $region33: #{tpu_custom_call.1} parent=31 // loop_pre_header
                _
              $region34: #{tpu_custom_call.1} parent=31 // loop_header
                %s263 = sphi 0, %s267
                %p264 = scmp.ge.s32.totalorder %s263, 1
                %s268 = sphi %s257, %s257
                %s269 = sphi %s251, %s251
              $region35: #{tpu_custom_call.1} parent=31 // loop_header_branch
                %266 = sbr.rel (%p264) target = $region39
              $region36: #{tpu_custom_call.1} parent=31 // loop_body
                %v270 = vld [vmem:[%s268] sm:$0xff]
                %271 = vst [vmem:[%s269] sm:$0xff] %v270
                %v272 = vld [vmem:[%s268 + $0x8] sm:$0xff]
                %273 = vst [vmem:[%s269 + $0x8] sm:$0xff] %v272
                %v274 = vld [vmem:[%s268 + $0x30] sm:$0xff]
                %275 = vst [vmem:[%s269 + $0x10] sm:$0xff] %v274
                %v276 = vld [vmem:[%s268 + $0x38] sm:$0xff]
                %277 = vst [vmem:[%s269 + $0x18] sm:$0xff] %v276
                %v278 = vld [vmem:[%s268 + $0x60] sm:$0xff]
                %279 = vst [vmem:[%s269 + $0x20] sm:$0xff] %v278
                %v280 = vld [vmem:[%s268 + $0x68] sm:$0xff]
                %281 = vst [vmem:[%s269 + $0x28] sm:$0xff] %v280
                %v282 = vld [vmem:[%s268 + $0x90] sm:$0xff]
                %283 = vst [vmem:[%s269 + $0x30] sm:$0xff] %v282
                %v284 = vld [vmem:[%s268 + $0x98] sm:$0xff]
                %285 = vst [vmem:[%s269 + $0x38] sm:$0xff] %v284
                %v286 = vld [vmem:[%s268 + $0xc0] sm:$0xff]
                %287 = vst [vmem:[%s269 + $0x40] sm:$0xff] %v286
                %v288 = vld [vmem:[%s268 + $0xc8] sm:$0xff]
                %289 = vst [vmem:[%s269 + $0x48] sm:$0xff] %v288
                %v290 = vld [vmem:[%s268 + $0xf0] sm:$0xff]
                %291 = vst [vmem:[%s269 + $0x50] sm:$0xff] %v290
                %v292 = vld [vmem:[%s268 + $0xf8] sm:$0xff]
                %293 = vst [vmem:[%s269 + $0x58] sm:$0xff] %v292
                %v294 = vld [vmem:[%s268 + $0x120] sm:$0xff]
                %295 = vst [vmem:[%s269 + $0x60] sm:$0xff] %v294
                %v296 = vld [vmem:[%s268 + $0x128] sm:$0xff]
                %297 = vst [vmem:[%s269 + $0x68] sm:$0xff] %v296
                %v298 = vld [vmem:[%s268 + $0x150] sm:$0xff]
                %299 = vst [vmem:[%s269 + $0x70] sm:$0xff] %v298
                %v300 = vld [vmem:[%s268 + $0x158] sm:$0xff]
                %301 = vst [vmem:[%s269 + $0x78] sm:$0xff] %v300
                %v302 = vld [vmem:[%s268 + $0x180] sm:$0xff]
                %303 = vst [vmem:[%s269 + $0x80] sm:$0xff] %v302
                %v304 = vld [vmem:[%s268 + $0x188] sm:$0xff]
                %305 = vst [vmem:[%s269 + $0x88] sm:$0xff] %v304
                %v306 = vld [vmem:[%s268 + $0x1b0] sm:$0xff]
                %307 = vst [vmem:[%s269 + $0x90] sm:$0xff] %v306
                %v308 = vld [vmem:[%s268 + $0x1b8] sm:$0xff]
                %309 = vst [vmem:[%s269 + $0x98] sm:$0xff] %v308
                %v310 = vld [vmem:[%s268 + $0x1e0] sm:$0xff]
                %311 = vst [vmem:[%s269 + $0xa0] sm:$0xff] %v310
                %v312 = vld [vmem:[%s268 + $0x1e8] sm:$0xff]
                %313 = vst [vmem:[%s269 + $0xa8] sm:$0xff] %v312
                %v314 = vld [vmem:[%s268 + $0x210] sm:$0xff]
                %315 = vst [vmem:[%s269 + $0xb0] sm:$0xff] %v314
                %v316 = vld [vmem:[%s268 + $0x218] sm:$0xff]
                %317 = vst [vmem:[%s269 + $0xb8] sm:$0xff] %v316
                %v318 = vld [vmem:[%s268 + $0x240] sm:$0xff]
                %319 = vst [vmem:[%s269 + $0xc0] sm:$0xff] %v318
                %v320 = vld [vmem:[%s268 + $0x248] sm:$0xff]
                %321 = vst [vmem:[%s269 + $0xc8] sm:$0xff] %v320
                %v322 = vld [vmem:[%s268 + $0x270] sm:$0xff]
                %323 = vst [vmem:[%s269 + $0xd0] sm:$0xff] %v322
                %v324 = vld [vmem:[%s268 + $0x278] sm:$0xff]
                %325 = vst [vmem:[%s269 + $0xd8] sm:$0xff] %v324
                %v326 = vld [vmem:[%s268 + $0x2a0] sm:$0xff]
                %327 = vst [vmem:[%s269 + $0xe0] sm:$0xff] %v326
                %v328 = vld [vmem:[%s268 + $0x2a8] sm:$0xff]
                %329 = vst [vmem:[%s269 + $0xe8] sm:$0xff] %v328
                %v330 = vld [vmem:[%s268 + $0x2d0] sm:$0xff]
                %331 = vst [vmem:[%s269 + $0xf0] sm:$0xff] %v330
                %v332 = vld [vmem:[%s268 + $0x2d8] sm:$0xff]
                %333 = vst [vmem:[%s269 + $0xf8] sm:$0xff] %v332
              $region37: #{tpu_custom_call.1} parent=31 // loop_footer
                %s267 = sadd.s32 1, %s263
              $region38: #{tpu_custom_call.1} parent=31 // loop_footer_branch
                %262 = sbr.rel target = $region34
              $region39: #{tpu_custom_call.1} parent=31 // loop_exit
                _
            $region32: #{tpu_custom_call.1} parent=27 // pred_fallthru
              _
            // Predicated region
            $region40: #{tpu_custom_call.1} parent=27 // pred_check
              _
            $region41: #{tpu_custom_call.1} parent=27 // pred_check_branch
              %335 = sbr.rel target = $region43
            $region42: #{tpu_custom_call.1} parent=27 // pred_region
              _
            $region43: #{tpu_custom_call.1} parent=27 // pred_fallthru
              _
          $region28: #{tpu_custom_call.1} parent=23 // pred_fallthru
            _
          %336 = vnop
        $region24: #{tpu_custom_call.1} parent=15 // pred_fallthru
          _
        // Predicated region
        $region44: #{tpu_custom_call.1} parent=15 // pred_check
          %p337 = pneg %p114
        $region45: #{tpu_custom_call.1} parent=15 // pred_check_branch
          %339 = sbr.rel (%p337) target = $region47
        $region46: #{tpu_custom_call.1} parent=15 // pred_region
          %s340 = smul.u32 16, %s25
          %p341 = scmp.lt.s32.totalorder %s26, 2
          %s342 = scalar_select %p341, %s26, 2
          %p343 = scmp.lt.s32.totalorder %s340, 47
          %s344 = scalar_select %p343, %s340, 47
          %s345 = smul.addr %s342, 48
          %s346 = sadd.s32 %s344, %s345
          %s347 = smul.addr %s346, 8
          %s348 = scalar_lea.vmem %s2, %s347
          %s349 = smul.u32 16, %s25
        $region47: #{tpu_custom_call.1} parent=15 // pred_fallthru
          _
        // Predicated region
        $region48: #{tpu_custom_call.1} parent=15 // pred_check
          %p350 = pneg %p142
        $region49: #{tpu_custom_call.1} parent=15 // pred_check_branch
          %352 = sbr.rel (%p350) target = $region51
        $region50: #{tpu_custom_call.1} parent=15 // pred_region
          %s353 = smul.u32 16, %s25
          %p354 = scmp.lt.s32.totalorder %s26, 2
          %s355 = scalar_select %p354, %s26, 2
          %p356 = scmp.lt.s32.totalorder %s353, 47
          %s357 = scalar_select %p356, %s353, 47
          %s358 = smul.addr %s355, 48
          %s359 = sadd.s32 %s357, %s358
          %s360 = smul.addr %s359, 8
          %s361 = scalar_lea.vmem %s3, %s360
          %s362 = smul.u32 16, %s25
        $region51: #{tpu_custom_call.1} parent=15 // pred_fallthru
          _
        // Predicated region
        $region52: #{tpu_custom_call.1} parent=15 // pred_check
          %p363 = pneg %p168
        $region53: #{tpu_custom_call.1} parent=15 // pred_check_branch
          %365 = sbr.rel (%p363) target = $region55
        $region54: #{tpu_custom_call.1} parent=15 // pred_region
          %p366 = scmp.lt.s32.totalorder %s25, 2
          %s367 = scalar_select %p366, %s25, 2
          %s368 = scalar_lea.vmem %s4, %s367
        $region55: #{tpu_custom_call.1} parent=15 // pred_fallthru
          _
      $region16: #{tpu_custom_call.1} parent=5 // pred_fallthru
        _
      %p369 = scmp.le.s32.totalorder 1, %s17
      %p370 = scmp.lt.s32.totalorder %s17, 10
      %p371 = pnand %p369, %p370
      %p372 = pneg %p371
      // Predicated region
      $region56: #{tpu_custom_call.1} parent=5 // pred_check
        _
      $region57: #{tpu_custom_call.1} parent=5 // pred_check_branch
        %374 = sbr.rel (%p371) target = $region59
      $region58: #{tpu_custom_call.1} parent=5 // pred_region
        %s375 = ssub.s32 %s17, 1
        %s376 = sand.u32 %s51, 1
        %s377 = scalar_lea.sflag [#allocation4], %s376
        %s378 = sand.u32 %s51, 1
        %s379 = smul.addr %s378, 16
        %s380 = scalar_lea.vmem [#allocation3], %s379
        // Predicated region
        $region60: #{tpu_custom_call.1} parent=58 // pred_check
          %p381 = pneg %p64
        $region61: #{tpu_custom_call.1} parent=58 // pred_check_branch
          %383 = sbr.rel (%p381) target = $region63
        $region62: #{tpu_custom_call.1} parent=58 // pred_region
          %384 = dma.done %s377, 256
        $region63: #{tpu_custom_call.1} parent=58 // pred_fallthru
          _
        %s385 = sand.u32 %s79, 1
        %s386 = sand.u32 %s79, 1
        %s387 = smul.addr %s386, 256
        %s388 = scalar_lea.vmem [#allocation6], %s387
        // Predicated region
        $region64: #{tpu_custom_call.1} parent=58 // pred_check
          %p389 = pneg %p92
        $region65: #{tpu_custom_call.1} parent=58 // pred_check_branch
          %391 = sbr.rel (%p389) target = $region67
        $region66: #{tpu_custom_call.1} parent=58 // pred_region
          _
        $region67: #{tpu_custom_call.1} parent=58 // pred_fallthru
          _
        %s392 = sand.u32 %s51, 1
        %s393 = scalar_lea.sflag [#allocation4], %s392
        %s394 = sand.u32 %s51, 1
        %s395 = smul.addr %s394, 16
        %s396 = scalar_lea.vmem [#allocation3], %s395
        %p397 = pneg %p64
        %p398 = pneg %p61
        %s399 = sand.u32 %s79, 1
        %s400 = sand.u32 %s79, 1
        %s401 = smul.addr %s400, 256
        %s402 = scalar_lea.vmem [#allocation6], %s401
        %p403 = pneg %p92
        %p404 = pneg %p89
        %s405 = smul.u32 16, %s28
        %p406 = scmp.lt.s32.totalorder %s29, 2
        %s407 = scalar_select %p406, %s29, 2
        %p408 = scmp.lt.s32.totalorder %s405, 47
        %s409 = scalar_select %p408, %s405, 47
        %s410 = smul.addr %s407, 48
        %s411 = sadd.s32 %s409, %s410
        %s412 = smul.addr %s411, 8
        %s413 = scalar_lea.vmem %s2, %s412
        %p414 = pneg %p120
        %p415 = pneg %p117
        %s416 = smul.u32 16, %s28
        %p417 = scmp.lt.s32.totalorder %s29, 2
        %s418 = scalar_select %p417, %s29, 2
        %p419 = scmp.lt.s32.totalorder %s416, 47
        %s420 = scalar_select %p419, %s416, 47
        %s421 = smul.addr %s418, 48
        %s422 = sadd.s32 %s420, %s421
        %s423 = smul.addr %s422, 8
        %s424 = scalar_lea.vmem %s3, %s423
        %p425 = pneg %p148
        %p426 = pneg %p145
        %p427 = scmp.lt.s32.totalorder %s28, 2
        %s428 = scalar_select %p427, %s28, 2
        %s429 = scalar_lea.vmem %s4, %s428
        %p430 = pneg %p174
        %p431 = pneg %p171
        %p432 = pneg %p202
        %p433 = pneg %p199
        %s434 = sand.u32 %s189, 1
        %s435 = scalar_lea.sflag [#allocation5], %s434
        %s436 = sand.u32 %s189, 1
        %s437 = smul.addr %s436, 16
        %s438 = scalar_lea.vmem [#allocation7], %s437
        %s439 = smul.u32 2, %s27
        %s440 = smul.u32 2, %s29
        %s441 = smul.u32 16, %s28
        %s442 = smul.u32 2, %s29
        %s443 = smul.u32 16, %s28
        %p444 = scmp.lt.s32.totalorder %s29, 2
        %s445 = scalar_select %p444, %s29, 2
        %p446 = scmp.lt.s32.totalorder %s443, 47
        %s447 = scalar_select %p446, %s443, 47
        %s448 = smul.addr %s445, 48
        %s449 = sadd.s32 %s447, %s448
        %s450 = smul.addr %s449, 8
        %s451 = scalar_lea.vmem %s2, %s450
        %s452 = smul.u32 16, %s28
        %s453 = smul.u32 16, %s28
        %p454 = scmp.lt.s32.totalorder %s29, 2
        %s455 = scalar_select %p454, %s29, 2
        %p456 = scmp.lt.s32.totalorder %s453, 47
        %s457 = scalar_select %p456, %s453, 47
        %s458 = smul.addr %s455, 48
        %s459 = sadd.s32 %s457, %s458
        %s460 = smul.addr %s459, 8
        %s461 = scalar_lea.vmem %s3, %s460
        %s462 = smul.u32 16, %s28
        %p463 = scmp.lt.s32.totalorder %s28, 2
        %s464 = scalar_select %p463, %s28, 2
        %s465 = scalar_lea.vmem %s4, %s464
        %s466 = smul.u32 2, %s27
        %p468 = scmp.eq.s32.totalorder %s29, 0
        // Predicated region
        $region68: #{tpu_custom_call.1} parent=58 // pred_check
          %p469 = pneg %p468
        $region69: #{tpu_custom_call.1} parent=58 // pred_check_branch
          %471 = sbr.rel (%p469) target = $region71
        $region70: #{tpu_custom_call.1} parent=58 // pred_region
          %472 = vst [vmem:[#allocation2] sm:$0xff] 0.0
          %473 = vst [vmem:[#allocation2 + $0x8] sm:$0xff] 0.0
        $region71: #{tpu_custom_call.1} parent=58 // pred_fallthru
          _
        %v474 = vld [vmem:[%s388] sm:$0xff]
        %v475 = vld [vmem:[%s388 + $0x8] sm:$0xff]
        %v476 = vld [vmem:[%s388 + $0x10] sm:$0xff]
        %v477 = vld [vmem:[%s388 + $0x18] sm:$0xff]
        %v478 = vld [vmem:[%s388 + $0x20] sm:$0xff]
        %v479 = vld [vmem:[%s388 + $0x28] sm:$0xff]
        %v480 = vld [vmem:[%s388 + $0x30] sm:$0xff]
        %v481 = vld [vmem:[%s388 + $0x38] sm:$0xff]
        %v482 = vld [vmem:[%s388 + $0x40] sm:$0xff]
        %v483 = vld [vmem:[%s388 + $0x48] sm:$0xff]
        %v484 = vld [vmem:[%s388 + $0x50] sm:$0xff]
        %v485 = vld [vmem:[%s388 + $0x58] sm:$0xff]
        %v486 = vld [vmem:[%s388 + $0x60] sm:$0xff]
        %v487 = vld [vmem:[%s388 + $0x68] sm:$0xff]
        %v488 = vld [vmem:[%s388 + $0x70] sm:$0xff]
        %v489 = vld [vmem:[%s388 + $0x78] sm:$0xff]
        %v490 = vld [vmem:[%s388 + $0x80] sm:$0xff]
        %v491 = vld [vmem:[%s388 + $0x88] sm:$0xff]
        %v492 = vld [vmem:[%s388 + $0x90] sm:$0xff]
        %v493 = vld [vmem:[%s388 + $0x98] sm:$0xff]
        %v494 = vld [vmem:[%s388 + $0xa0] sm:$0xff]
        %v495 = vld [vmem:[%s388 + $0xa8] sm:$0xff]
        %v496 = vld [vmem:[%s388 + $0xb0] sm:$0xff]
        %v497 = vld [vmem:[%s388 + $0xb8] sm:$0xff]
        %v498 = vld [vmem:[%s388 + $0xc0] sm:$0xff]
        %v499 = vld [vmem:[%s388 + $0xc8] sm:$0xff]
        %v500 = vld [vmem:[%s388 + $0xd0] sm:$0xff]
        %v501 = vld [vmem:[%s388 + $0xd8] sm:$0xff]
        %v502 = vld [vmem:[%s388 + $0xe0] sm:$0xff]
        %v503 = vld [vmem:[%s388 + $0xe8] sm:$0xff]
        %v504 = vld [vmem:[%s388 + $0xf0] sm:$0xff]
        %v505 = vld [vmem:[%s388 + $0xf8] sm:$0xff]
        %v506 = vld [vmem:[%s451] sm:$0xff]
        %v507 = vld [vmem:[%s451 + $0x8] sm:$0xff]
        %v508 = vld [vmem:[%s451 + $0x10] sm:$0xff]
        %v509 = vld [vmem:[%s451 + $0x18] sm:$0xff]
        %v510 = vld [vmem:[%s451 + $0x20] sm:$0xff]
        %v511 = vld [vmem:[%s451 + $0x28] sm:$0xff]
        %v512 = vld [vmem:[%s451 + $0x30] sm:$0xff]
        %v513 = vld [vmem:[%s451 + $0x38] sm:$0xff]
        %v514 = vld [vmem:[%s451 + $0x40] sm:$0xff]
        %v515 = vld [vmem:[%s451 + $0x48] sm:$0xff]
        %v516 = vld [vmem:[%s451 + $0x50] sm:$0xff]
        %v517 = vld [vmem:[%s451 + $0x58] sm:$0xff]
        %v518 = vld [vmem:[%s451 + $0x60] sm:$0xff]
        %v519 = vld [vmem:[%s451 + $0x68] sm:$0xff]
        %v520 = vld [vmem:[%s451 + $0x70] sm:$0xff]
        %v521 = vld [vmem:[%s451 + $0x78] sm:$0xff]
        %522 = vmax.xlane.f32.xlu0 %v474
        %v523 = vpop.xlane.xlu0 %522
        %524 = vmax.xlane.f32.xlu0 %v476
        %v525 = vpop.xlane.xlu0 %524
        %526 = vmax.xlane.f32.xlu0 %v478
        %v527 = vpop.xlane.xlu0 %526
        %528 = vmax.xlane.f32.xlu0 %v480
        %v529 = vpop.xlane.xlu0 %528
        %530 = vmax.xlane.f32.xlu0 %v482
        %v531 = vpop.xlane.xlu0 %530
        %532 = vmax.xlane.f32.xlu0 %v484
        %v533 = vpop.xlane.xlu0 %532
        %534 = vmax.xlane.f32.xlu0 %v486
        %v535 = vpop.xlane.xlu0 %534
        %536 = vmax.xlane.f32.xlu0 %v488
        %v537 = vpop.xlane.xlu0 %536
        %538 = vmax.xlane.f32.xlu0 %v490
        %v539 = vpop.xlane.xlu0 %538
        %540 = vmax.xlane.f32.xlu0 %v492
        %v541 = vpop.xlane.xlu0 %540
        %542 = vmax.xlane.f32.xlu0 %v494
        %v543 = vpop.xlane.xlu0 %542
        %544 = vmax.xlane.f32.xlu0 %v496
        %v545 = vpop.xlane.xlu0 %544
        %546 = vmax.xlane.f32.xlu0 %v498
        %v547 = vpop.xlane.xlu0 %546
        %548 = vmax.xlane.f32.xlu0 %v500
        %v549 = vpop.xlane.xlu0 %548
        %550 = vmax.xlane.f32.xlu0 %v502
        %v551 = vpop.xlane.xlu0 %550
        %552 = vmax.xlane.f32.xlu0 %v504
        %v553 = vpop.xlane.xlu0 %552
        %v554 = vmul.f32 %v523, %v506
        %v555 = vmul.f32 %v525, %v507
        %v556 = vmul.f32 %v527, %v508
        %v557 = vmul.f32 %v529, %v509
        %v558 = vmul.f32 %v531, %v510
        %v559 = vmul.f32 %v533, %v511
        %v560 = vmul.f32 %v535, %v512
        %v561 = vmul.f32 %v537, %v513
        %v562 = vmul.f32 %v539, %v514
        %v563 = vmul.f32 %v541, %v515
        %v564 = vmul.f32 %v543, %v516
        %v565 = vmul.f32 %v545, %v517
        %v566 = vmul.f32 %v547, %v518
        %v567 = vmul.f32 %v549, %v519
        %v568 = vmul.f32 %v551, %v520
        %v569 = vmul.f32 %v553, %v521
        %v570 = vrcp.pop 7.0
        %v571 = vmul.f32 %v554, %v570
        %v572 = vmul.f32 %v555, %v570
        %v573 = vmul.f32 %v556, %v570
        %v574 = vmul.f32 %v557, %v570
        %v575 = vmul.f32 %v558, %v570
        %v576 = vmul.f32 %v559, %v570
        %v577 = vmul.f32 %v560, %v570
        %v578 = vmul.f32 %v561, %v570
        %v579 = vmul.f32 %v562, %v570
        %v580 = vmul.f32 %v563, %v570
        %v581 = vmul.f32 %v564, %v570
        %v582 = vmul.f32 %v565, %v570
        %v583 = vmul.f32 %v566, %v570
        %v584 = vmul.f32 %v567, %v570
        %v585 = vmul.f32 %v568, %v570
        %v586 = vmul.f32 %v569, %v570
        %v587 = vrcp.pop %v571
        %v588 = vmul.f32 1.0, %v587
        %v589 = vrcp.pop %v572
        %v590 = vmul.f32 1.0, %v589
        %v591 = vrcp.pop %v573
        %v592 = vmul.f32 1.0, %v591
        %v593 = vrcp.pop %v574
        %v594 = vmul.f32 1.0, %v593
        %v595 = vrcp.pop %v575
        %v596 = vmul.f32 1.0, %v595
        %v597 = vrcp.pop %v576
        %v598 = vmul.f32 1.0, %v597
        %v599 = vrcp.pop %v577
        %v600 = vmul.f32 1.0, %v599
        %v601 = vrcp.pop %v578
        %v602 = vmul.f32 1.0, %v601
        %v603 = vrcp.pop %v579
        %v604 = vmul.f32 1.0, %v603
        %v605 = vrcp.pop %v580
        %v606 = vmul.f32 1.0, %v605
        %v607 = vrcp.pop %v581
        %v608 = vmul.f32 1.0, %v607
        %v609 = vrcp.pop %v582
        %v610 = vmul.f32 1.0, %v609
        %v611 = vrcp.pop %v583
        %v612 = vmul.f32 1.0, %v611
        %v613 = vrcp.pop %v584
        %v614 = vmul.f32 1.0, %v613
        %v615 = vrcp.pop %v585
        %v616 = vmul.f32 1.0, %v615
        %v617 = vrcp.pop %v586
        %v618 = vmul.f32 1.0, %v617
        %620 = vset.pattern.permute.xlu0 0
        %621 = vperm.xlu0 %620, %v588
        %v622 = vpop.permute.xlu0 %621
        %625 = vset.pattern.permute.xlu0 0
        %626 = vperm.xlu0 %625, %v590
        %v627 = vpop.permute.xlu0 %626
        %630 = vset.pattern.permute.xlu0 0
        %631 = vperm.xlu0 %630, %v592
        %v632 = vpop.permute.xlu0 %631
        %635 = vset.pattern.permute.xlu0 0
        %636 = vperm.xlu0 %635, %v594
        %v637 = vpop.permute.xlu0 %636
        %640 = vset.pattern.permute.xlu0 0
        %641 = vperm.xlu0 %640, %v596
        %v642 = vpop.permute.xlu0 %641
        %645 = vset.pattern.permute.xlu0 0
        %646 = vperm.xlu0 %645, %v598
        %v647 = vpop.permute.xlu0 %646
        %650 = vset.pattern.permute.xlu0 0
        %651 = vperm.xlu0 %650, %v600
        %v652 = vpop.permute.xlu0 %651
        %655 = vset.pattern.permute.xlu0 0
        %656 = vperm.xlu0 %655, %v602
        %v657 = vpop.permute.xlu0 %656
        %660 = vset.pattern.permute.xlu0 0
        %661 = vperm.xlu0 %660, %v604
        %v662 = vpop.permute.xlu0 %661
        %665 = vset.pattern.permute.xlu0 0
        %666 = vperm.xlu0 %665, %v606
        %v667 = vpop.permute.xlu0 %666
        %670 = vset.pattern.permute.xlu0 0
        %671 = vperm.xlu0 %670, %v608
        %v672 = vpop.permute.xlu0 %671
        %675 = vset.pattern.permute.xlu0 0
        %676 = vperm.xlu0 %675, %v610
        %v677 = vpop.permute.xlu0 %676
        %680 = vset.pattern.permute.xlu0 0
        %681 = vperm.xlu0 %680, %v612
        %v682 = vpop.permute.xlu0 %681
        %685 = vset.pattern.permute.xlu0 0
        %686 = vperm.xlu0 %685, %v614
        %v687 = vpop.permute.xlu0 %686
        %690 = vset.pattern.permute.xlu0 0
        %691 = vperm.xlu0 %690, %v616
        %v692 = vpop.permute.xlu0 %691
        %695 = vset.pattern.permute.xlu0 0
        %696 = vperm.xlu0 %695, %v618
        %v697 = vpop.permute.xlu0 %696
        %v699 = vmul.f32 %v474, %v622
        %v700 = vmul.f32 %v476, %v627
        %v701 = vmul.f32 %v478, %v632
        %v702 = vmul.f32 %v480, %v637
        %v703 = vmul.f32 %v482, %v642
        %v704 = vmul.f32 %v484, %v647
        %v705 = vmul.f32 %v486, %v652
        %v706 = vmul.f32 %v488, %v657
        %v707 = vmul.f32 %v490, %v662
        %v708 = vmul.f32 %v492, %v667
        %v709 = vmul.f32 %v494, %v672
        %v710 = vmul.f32 %v496, %v677
        %v711 = vmul.f32 %v498, %v682
        %v712 = vmul.f32 %v500, %v687
        %v713 = vmul.f32 %v502, %v692
        %v714 = vmul.f32 %v504, %v697
        %v715 = vround.ne.pseudo %v699
        %v716 = vround.ne.pseudo %v700
        %v717 = vround.ne.pseudo %v701
        %v718 = vround.ne.pseudo %v702
        %v719 = vround.ne.pseudo %v703
        %v720 = vround.ne.pseudo %v704
        %v721 = vround.ne.pseudo %v705
        %v722 = vround.ne.pseudo %v706
        %v723 = vround.ne.pseudo %v707
        %v724 = vround.ne.pseudo %v708
        %v725 = vround.ne.pseudo %v709
        %v726 = vround.ne.pseudo %v710
        %v727 = vround.ne.pseudo %v711
        %v728 = vround.ne.pseudo %v712
        %v729 = vround.ne.pseudo %v713
        %v730 = vround.ne.pseudo %v714
        %v731 = vmax.f32 %v715, -8.0
        %v732 = vmax.f32 %v716, -8.0
        %v733 = vmax.f32 %v717, -8.0
        %v734 = vmax.f32 %v718, -8.0
        %v735 = vmax.f32 %v719, -8.0
        %v736 = vmax.f32 %v720, -8.0
        %v737 = vmax.f32 %v721, -8.0
        %v738 = vmax.f32 %v722, -8.0
        %v739 = vmax.f32 %v723, -8.0
        %v740 = vmax.f32 %v724, -8.0
        %v741 = vmax.f32 %v725, -8.0
        %v742 = vmax.f32 %v726, -8.0
        %v743 = vmax.f32 %v727, -8.0
        %v744 = vmax.f32 %v728, -8.0
        %v745 = vmax.f32 %v729, -8.0
        %v746 = vmax.f32 %v730, -8.0
        %v747 = vmin.f32 %v731, 7.0
        %v748 = vmin.f32 %v732, 7.0
        %v749 = vmin.f32 %v733, 7.0
        %v750 = vmin.f32 %v734, 7.0
        %v751 = vmin.f32 %v735, 7.0
        %v752 = vmin.f32 %v736, 7.0
        %v753 = vmin.f32 %v737, 7.0
        %v754 = vmin.f32 %v738, 7.0
        %v755 = vmin.f32 %v739, 7.0
        %v756 = vmin.f32 %v740, 7.0
        %v757 = vmin.f32 %v741, 7.0
        %v758 = vmin.f32 %v742, 7.0
        %v759 = vmin.f32 %v743, 7.0
        %v760 = vmin.f32 %v744, 7.0
        %v761 = vmin.f32 %v745, 7.0
        %v762 = vmin.f32 %v746, 7.0
        %764 = vset.pattern.permute.xlu0 0
        %765 = vperm.xlu0 %764, %v571
        %v766 = vpop.permute.xlu0 %765
        %769 = vset.pattern.permute.xlu0 0
        %770 = vperm.xlu0 %769, %v572
        %v771 = vpop.permute.xlu0 %770
        %774 = vset.pattern.permute.xlu0 0
        %775 = vperm.xlu0 %774, %v573
        %v776 = vpop.permute.xlu0 %775
        %779 = vset.pattern.permute.xlu0 0
        %780 = vperm.xlu0 %779, %v574
        %v781 = vpop.permute.xlu0 %780
        %784 = vset.pattern.permute.xlu0 0
        %785 = vperm.xlu0 %784, %v575
        %v786 = vpop.permute.xlu0 %785
        %789 = vset.pattern.permute.xlu0 0
        %790 = vperm.xlu0 %789, %v576
        %v791 = vpop.permute.xlu0 %790
        %794 = vset.pattern.permute.xlu0 0
        %795 = vperm.xlu0 %794, %v577
        %v796 = vpop.permute.xlu0 %795
        %799 = vset.pattern.permute.xlu0 0
        %800 = vperm.xlu0 %799, %v578
        %v801 = vpop.permute.xlu0 %800
        %804 = vset.pattern.permute.xlu0 0
        %805 = vperm.xlu0 %804, %v579
        %v806 = vpop.permute.xlu0 %805
        %809 = vset.pattern.permute.xlu0 0
        %810 = vperm.xlu0 %809, %v580
        %v811 = vpop.permute.xlu0 %810
        %814 = vset.pattern.permute.xlu0 0
        %815 = vperm.xlu0 %814, %v581
        %v816 = vpop.permute.xlu0 %815
        %819 = vset.pattern.permute.xlu0 0
        %820 = vperm.xlu0 %819, %v582
        %v821 = vpop.permute.xlu0 %820
        %824 = vset.pattern.permute.xlu0 0
        %825 = vperm.xlu0 %824, %v583
        %v826 = vpop.permute.xlu0 %825
        %829 = vset.pattern.permute.xlu0 0
        %830 = vperm.xlu0 %829, %v584
        %v831 = vpop.permute.xlu0 %830
        %834 = vset.pattern.permute.xlu0 0
        %835 = vperm.xlu0 %834, %v585
        %v836 = vpop.permute.xlu0 %835
        %839 = vset.pattern.permute.xlu0 0
        %840 = vperm.xlu0 %839, %v586
        %v841 = vpop.permute.xlu0 %840
        %v843 = vmul.f32 %v747, %v766
        %v844 = vmul.f32 %v748, %v771
        %v845 = vmul.f32 %v749, %v776
        %v846 = vmul.f32 %v750, %v781
        %v847 = vmul.f32 %v751, %v786
        %v848 = vmul.f32 %v752, %v791
        %v849 = vmul.f32 %v753, %v796
        %v850 = vmul.f32 %v754, %v801
        %v851 = vmul.f32 %v755, %v806
        %v852 = vmul.f32 %v756, %v811
        %v853 = vmul.f32 %v757, %v816
        %v854 = vmul.f32 %v758, %v821
        %v855 = vmul.f32 %v759, %v826
        %v856 = vmul.f32 %v760, %v831
        %v857 = vmul.f32 %v761, %v836
        %v858 = vmul.f32 %v762, %v841
        %859 = vmax.xlane.f32.xlu0 %v475
        %v860 = vpop.xlane.xlu0 %859
        %861 = vmax.xlane.f32.xlu0 %v477
        %v862 = vpop.xlane.xlu0 %861
        %863 = vmax.xlane.f32.xlu0 %v479
        %v864 = vpop.xlane.xlu0 %863
        %865 = vmax.xlane.f32.xlu0 %v481
        %v866 = vpop.xlane.xlu0 %865
        %867 = vmax.xlane.f32.xlu0 %v483
        %v868 = vpop.xlane.xlu0 %867
        %869 = vmax.xlane.f32.xlu0 %v485
        %v870 = vpop.xlane.xlu0 %869
        %871 = vmax.xlane.f32.xlu0 %v487
        %v872 = vpop.xlane.xlu0 %871
        %873 = vmax.xlane.f32.xlu0 %v489
        %v874 = vpop.xlane.xlu0 %873
        %875 = vmax.xlane.f32.xlu0 %v491
        %v876 = vpop.xlane.xlu0 %875
        %877 = vmax.xlane.f32.xlu0 %v493
        %v878 = vpop.xlane.xlu0 %877
        %879 = vmax.xlane.f32.xlu0 %v495
        %v880 = vpop.xlane.xlu0 %879
        %881 = vmax.xlane.f32.xlu0 %v497
        %v882 = vpop.xlane.xlu0 %881
        %883 = vmax.xlane.f32.xlu0 %v499
        %v884 = vpop.xlane.xlu0 %883
        %885 = vmax.xlane.f32.xlu0 %v501
        %v886 = vpop.xlane.xlu0 %885
        %887 = vmax.xlane.f32.xlu0 %v503
        %v888 = vpop.xlane.xlu0 %887
        %889 = vmax.xlane.f32.xlu0 %v505
        %v890 = vpop.xlane.xlu0 %889
        %v891 = vmul.f32 %v860, %v506
        %v892 = vmul.f32 %v862, %v507
        %v893 = vmul.f32 %v864, %v508
        %v894 = vmul.f32 %v866, %v509
        %v895 = vmul.f32 %v868, %v510
        %v896 = vmul.f32 %v870, %v511
        %v897 = vmul.f32 %v872, %v512
        %v898 = vmul.f32 %v874, %v513
        %v899 = vmul.f32 %v876, %v514
        %v900 = vmul.f32 %v878, %v515
        %v901 = vmul.f32 %v880, %v516
        %v902 = vmul.f32 %v882, %v517
        %v903 = vmul.f32 %v884, %v518
        %v904 = vmul.f32 %v886, %v519
        %v905 = vmul.f32 %v888, %v520
        %v906 = vmul.f32 %v890, %v521
        %v907 = vmul.f32 %v891, %v570
        %v908 = vmul.f32 %v892, %v570
        %v909 = vmul.f32 %v893, %v570
        %v910 = vmul.f32 %v894, %v570
        %v911 = vmul.f32 %v895, %v570
        %v912 = vmul.f32 %v896, %v570
        %v913 = vmul.f32 %v897, %v570
        %v914 = vmul.f32 %v898, %v570
        %v915 = vmul.f32 %v899, %v570
        %v916 = vmul.f32 %v900, %v570
        %v917 = vmul.f32 %v901, %v570
        %v918 = vmul.f32 %v902, %v570
        %v919 = vmul.f32 %v903, %v570
        %v920 = vmul.f32 %v904, %v570
        %v921 = vmul.f32 %v905, %v570
        %v922 = vmul.f32 %v906, %v570
        %v923 = vrcp.pop %v907
        %v924 = vmul.f32 1.0, %v923
        %v925 = vrcp.pop %v908
        %v926 = vmul.f32 1.0, %v925
        %v927 = vrcp.pop %v909
        %v928 = vmul.f32 1.0, %v927
        %v929 = vrcp.pop %v910
        %v930 = vmul.f32 1.0, %v929
        %v931 = vrcp.pop %v911
        %v932 = vmul.f32 1.0, %v931
        %v933 = vrcp.pop %v912
        %v934 = vmul.f32 1.0, %v933
        %v935 = vrcp.pop %v913
        %v936 = vmul.f32 1.0, %v935
        %v937 = vrcp.pop %v914
        %v938 = vmul.f32 1.0, %v937
        %v939 = vrcp.pop %v915
        %v940 = vmul.f32 1.0, %v939
        %v941 = vrcp.pop %v916
        %v942 = vmul.f32 1.0, %v941
        %v943 = vrcp.pop %v917
        %v944 = vmul.f32 1.0, %v943
        %v945 = vrcp.pop %v918
        %v946 = vmul.f32 1.0, %v945
        %v947 = vrcp.pop %v919
        %v948 = vmul.f32 1.0, %v947
        %v949 = vrcp.pop %v920
        %v950 = vmul.f32 1.0, %v949
        %v951 = vrcp.pop %v921
        %v952 = vmul.f32 1.0, %v951
        %v953 = vrcp.pop %v922
        %v954 = vmul.f32 1.0, %v953
        %956 = vset.pattern.permute.xlu0 1
        %957 = vperm.xlu0 %956, %v924
        %v958 = vpop.permute.xlu0 %957
        %961 = vset.pattern.permute.xlu0 1
        %962 = vperm.xlu0 %961, %v926
        %v963 = vpop.permute.xlu0 %962
        %966 = vset.pattern.permute.xlu0 1
        %967 = vperm.xlu0 %966, %v928
        %v968 = vpop.permute.xlu0 %967
        %971 = vset.pattern.permute.xlu0 1
        %972 = vperm.xlu0 %971, %v930
        %v973 = vpop.permute.xlu0 %972
        %976 = vset.pattern.permute.xlu0 1
        %977 = vperm.xlu0 %976, %v932
        %v978 = vpop.permute.xlu0 %977
        %981 = vset.pattern.permute.xlu0 1
        %982 = vperm.xlu0 %981, %v934
        %v983 = vpop.permute.xlu0 %982
        %986 = vset.pattern.permute.xlu0 1
        %987 = vperm.xlu0 %986, %v936
        %v988 = vpop.permute.xlu0 %987
        %991 = vset.pattern.permute.xlu0 1
        %992 = vperm.xlu0 %991, %v938
        %v993 = vpop.permute.xlu0 %992
        %996 = vset.pattern.permute.xlu0 1
        %997 = vperm.xlu0 %996, %v940
        %v998 = vpop.permute.xlu0 %997
        %1001 = vset.pattern.permute.xlu0 1
        %1002 = vperm.xlu0 %1001, %v942
        %v1003 = vpop.permute.xlu0 %1002
        %1006 = vset.pattern.permute.xlu0 1
        %1007 = vperm.xlu0 %1006, %v944
        %v1008 = vpop.permute.xlu0 %1007
        %1011 = vset.pattern.permute.xlu0 1
        %1012 = vperm.xlu0 %1011, %v946
        %v1013 = vpop.permute.xlu0 %1012
        %1016 = vset.pattern.permute.xlu0 1
        %1017 = vperm.xlu0 %1016, %v948
        %v1018 = vpop.permute.xlu0 %1017
        %1021 = vset.pattern.permute.xlu0 1
        %1022 = vperm.xlu0 %1021, %v950
        %v1023 = vpop.permute.xlu0 %1022
        %1026 = vset.pattern.permute.xlu0 1
        %1027 = vperm.xlu0 %1026, %v952
        %v1028 = vpop.permute.xlu0 %1027
        %1031 = vset.pattern.permute.xlu0 1
        %1032 = vperm.xlu0 %1031, %v954
        %v1033 = vpop.permute.xlu0 %1032
        %v1035 = vmul.f32 %v475, %v958
        %v1036 = vmul.f32 %v477, %v963
        %v1037 = vmul.f32 %v479, %v968
        %v1038 = vmul.f32 %v481, %v973
        %v1039 = vmul.f32 %v483, %v978
        %v1040 = vmul.f32 %v485, %v983
        %v1041 = vmul.f32 %v487, %v988
        %v1042 = vmul.f32 %v489, %v993
        %v1043 = vmul.f32 %v491, %v998
        %v1044 = vmul.f32 %v493, %v1003
        %v1045 = vmul.f32 %v495, %v1008
        %v1046 = vmul.f32 %v497, %v1013
        %v1047 = vmul.f32 %v499, %v1018
        %v1048 = vmul.f32 %v501, %v1023
        %v1049 = vmul.f32 %v503, %v1028
        %v1050 = vmul.f32 %v505, %v1033
        %v1051 = vround.ne.pseudo %v1035
        %v1052 = vround.ne.pseudo %v1036
        %v1053 = vround.ne.pseudo %v1037
        %v1054 = vround.ne.pseudo %v1038
        %v1055 = vround.ne.pseudo %v1039
        %v1056 = vround.ne.pseudo %v1040
        %v1057 = vround.ne.pseudo %v1041
        %v1058 = vround.ne.pseudo %v1042
        %v1059 = vround.ne.pseudo %v1043
        %v1060 = vround.ne.pseudo %v1044
        %v1061 = vround.ne.pseudo %v1045
        %v1062 = vround.ne.pseudo %v1046
        %v1063 = vround.ne.pseudo %v1047
        %v1064 = vround.ne.pseudo %v1048
        %v1065 = vround.ne.pseudo %v1049
        %v1066 = vround.ne.pseudo %v1050
        %v1067 = vmax.f32 %v1051, -8.0
        %v1068 = vmax.f32 %v1052, -8.0
        %v1069 = vmax.f32 %v1053, -8.0
        %v1070 = vmax.f32 %v1054, -8.0
        %v1071 = vmax.f32 %v1055, -8.0
        %v1072 = vmax.f32 %v1056, -8.0
        %v1073 = vmax.f32 %v1057, -8.0
        %v1074 = vmax.f32 %v1058, -8.0
        %v1075 = vmax.f32 %v1059, -8.0
        %v1076 = vmax.f32 %v1060, -8.0
        %v1077 = vmax.f32 %v1061, -8.0
        %v1078 = vmax.f32 %v1062, -8.0
        %v1079 = vmax.f32 %v1063, -8.0
        %v1080 = vmax.f32 %v1064, -8.0
        %v1081 = vmax.f32 %v1065, -8.0
        %v1082 = vmax.f32 %v1066, -8.0
        %v1083 = vmin.f32 %v1067, 7.0
        %v1084 = vmin.f32 %v1068, 7.0
        %v1085 = vmin.f32 %v1069, 7.0
        %v1086 = vmin.f32 %v1070, 7.0
        %v1087 = vmin.f32 %v1071, 7.0
        %v1088 = vmin.f32 %v1072, 7.0
        %v1089 = vmin.f32 %v1073, 7.0
        %v1090 = vmin.f32 %v1074, 7.0
        %v1091 = vmin.f32 %v1075, 7.0
        %v1092 = vmin.f32 %v1076, 7.0
        %v1093 = vmin.f32 %v1077, 7.0
        %v1094 = vmin.f32 %v1078, 7.0
        %v1095 = vmin.f32 %v1079, 7.0
        %v1096 = vmin.f32 %v1080, 7.0
        %v1097 = vmin.f32 %v1081, 7.0
        %v1098 = vmin.f32 %v1082, 7.0
        %1100 = vset.pattern.permute.xlu0 1
        %1101 = vperm.xlu0 %1100, %v907
        %v1102 = vpop.permute.xlu0 %1101
        %1105 = vset.pattern.permute.xlu0 1
        %1106 = vperm.xlu0 %1105, %v908
        %v1107 = vpop.permute.xlu0 %1106
        %1110 = vset.pattern.permute.xlu0 1
        %1111 = vperm.xlu0 %1110, %v909
        %v1112 = vpop.permute.xlu0 %1111
        %1115 = vset.pattern.permute.xlu0 1
        %1116 = vperm.xlu0 %1115, %v910
        %v1117 = vpop.permute.xlu0 %1116
        %1120 = vset.pattern.permute.xlu0 1
        %1121 = vperm.xlu0 %1120, %v911
        %v1122 = vpop.permute.xlu0 %1121
        %1125 = vset.pattern.permute.xlu0 1
        %1126 = vperm.xlu0 %1125, %v912
        %v1127 = vpop.permute.xlu0 %1126
        %1130 = vset.pattern.permute.xlu0 1
        %1131 = vperm.xlu0 %1130, %v913
        %v1132 = vpop.permute.xlu0 %1131
        %1135 = vset.pattern.permute.xlu0 1
        %1136 = vperm.xlu0 %1135, %v914
        %v1137 = vpop.permute.xlu0 %1136
        %1140 = vset.pattern.permute.xlu0 1
        %1141 = vperm.xlu0 %1140, %v915
        %v1142 = vpop.permute.xlu0 %1141
        %1145 = vset.pattern.permute.xlu0 1
        %1146 = vperm.xlu0 %1145, %v916
        %v1147 = vpop.permute.xlu0 %1146
        %1150 = vset.pattern.permute.xlu0 1
        %1151 = vperm.xlu0 %1150, %v917
        %v1152 = vpop.permute.xlu0 %1151
        %1155 = vset.pattern.permute.xlu0 1
        %1156 = vperm.xlu0 %1155, %v918
        %v1157 = vpop.permute.xlu0 %1156
        %1160 = vset.pattern.permute.xlu0 1
        %1161 = vperm.xlu0 %1160, %v919
        %v1162 = vpop.permute.xlu0 %1161
        %1165 = vset.pattern.permute.xlu0 1
        %1166 = vperm.xlu0 %1165, %v920
        %v1167 = vpop.permute.xlu0 %1166
        %1170 = vset.pattern.permute.xlu0 1
        %1171 = vperm.xlu0 %1170, %v921
        %v1172 = vpop.permute.xlu0 %1171
        %1175 = vset.pattern.permute.xlu0 1
        %1176 = vperm.xlu0 %1175, %v922
        %v1177 = vpop.permute.xlu0 %1176
        %v1179 = vmul.f32 %v1083, %v1102
        %v1180 = vmul.f32 %v1084, %v1107
        %v1181 = vmul.f32 %v1085, %v1112
        %v1182 = vmul.f32 %v1086, %v1117
        %v1183 = vmul.f32 %v1087, %v1122
        %v1184 = vmul.f32 %v1088, %v1127
        %v1185 = vmul.f32 %v1089, %v1132
        %v1186 = vmul.f32 %v1090, %v1137
        %v1187 = vmul.f32 %v1091, %v1142
        %v1188 = vmul.f32 %v1092, %v1147
        %v1189 = vmul.f32 %v1093, %v1152
        %v1190 = vmul.f32 %v1094, %v1157
        %v1191 = vmul.f32 %v1095, %v1162
        %v1192 = vmul.f32 %v1096, %v1167
        %v1193 = vmul.f32 %v1097, %v1172
        %v1194 = vmul.f32 %v1098, %v1177
        %v1195 = vpack.c.bf16 %v844, %v843
        %v1196 = vpack.c.bf16 %v1180, %v1179
        %v1197 = vpack.c.bf16 %v846, %v845
        %v1198 = vpack.c.bf16 %v1182, %v1181
        %v1199 = vpack.c.bf16 %v848, %v847
        %v1200 = vpack.c.bf16 %v1184, %v1183
        %v1201 = vpack.c.bf16 %v850, %v849
        %v1202 = vpack.c.bf16 %v1186, %v1185
        %v1203 = vpack.c.bf16 %v852, %v851
        %v1204 = vpack.c.bf16 %v1188, %v1187
        %v1205 = vpack.c.bf16 %v854, %v853
        %v1206 = vpack.c.bf16 %v1190, %v1189
        %v1207 = vpack.c.bf16 %v856, %v855
        %v1208 = vpack.c.bf16 %v1192, %v1191
        %v1209 = vpack.c.bf16 %v858, %v857
        %v1210 = vpack.c.bf16 %v1194, %v1193
        %v1211 = vld [vmem:[#allocation2] sm:$0xff]
        %v1212 = vld [vmem:[#allocation2 + $0x8] sm:$0xff]
        %v1213 = vld [vmem:[%s380] sm:$0xff]
        %v1214 = vld [vmem:[%s380 + $0x8] sm:$0xff]
        %v1217 = vunpack.c.l.b16 %v1213
        %v1218 = vunpack.c.h.b16 %v1213
        %v1219 = vunpack.c.l.b16 %v1214
        %v1220 = vunpack.c.h.b16 %v1214
        %v1221 = vpack.c.b16 %v1219, %v1217
        %v1222 = vpack.c.b16 %v1220, %v1218
        %1225 = vmatprep.subr.bf16.mxu0 %v1196
        %1226 = vmatpush1.bf16.xpose.msra.mxu0 %v1195
        %1227 = vmatprep.subr.bf16.mxu0 %v1198
        %1228 = vmatpush1.bf16.xpose.msra.mxu0 %v1197
        %1229 = vmatprep.subr.bf16.mxu0 %v1200
        %1230 = vmatpush1.bf16.xpose.msra.mxu0 %v1199
        %1231 = vmatprep.subr.bf16.mxu0 %v1202
        %1232 = vmatpush1.bf16.xpose.msra.mxu0 %v1201
        %1233 = vmatprep.subr.bf16.mxu0 %v1204
        %1234 = vmatpush1.bf16.xpose.msra.mxu0 %v1203
        %1235 = vmatprep.subr.bf16.mxu0 %v1206
        %1236 = vmatpush1.bf16.xpose.msra.mxu0 %v1205
        %1237 = vmatprep.subr.bf16.mxu0 %v1208
        %1238 = vmatpush1.bf16.xpose.msra.mxu0 %v1207
        %1239 = vmatprep.subr.bf16.mxu0 %v1210
        %1240 = vmatpush1.bf16.xpose.msra.mxu0 %v1209
        %1241 = vmatprep.subr.bf16.mxu0 0
        %1242 = vmatpush1.bf16.xpose.msra.mxu0 0
        %1243 = vmatprep.subr.bf16.mxu0 0
        %1244 = vmatpush1.bf16.xpose.msra.mxu0 0
        %1245 = vmatprep.subr.bf16.mxu0 0
        %1246 = vmatpush1.bf16.xpose.msra.mxu0 0
        %1247 = vmatprep.subr.bf16.mxu0 0
        %1248 = vmatpush1.bf16.xpose.msra.mxu0 0
        %1249 = vmatprep.subr.bf16.mxu0 0
        %1250 = vmatpush1.bf16.xpose.msra.mxu0 0
        %1251 = vmatprep.subr.bf16.mxu0 0
        %1252 = vmatpush1.bf16.xpose.msra.mxu0 0
        %1253 = vmatprep.subr.bf16.mxu0 0
        %1254 = vmatpush1.bf16.xpose.msra.mxu0 0
        %1255 = vmatprep.subr.bf16.mxu0 0
        %1256 = vmatpush1.bf16.xpose.msra.mxu0 0
        %1257 = vmatprep.mubr.bf16.mxu0 %v1222
        %1258 = vmatmul.mubr.bf16.gmra.mrb[0].mxu0 %v1221
        %v1259 = vpop.f32.mrb[0].mxu0
        %v1260 = vadd.f32 0.0, %v1259
        %v1261 = vpop.f32.mrb[0].mxu0
        %v1262 = vpop.f32.mrb[0].mxu0
        %v1263 = vadd.f32 0.0, %v1262
        %v1264 = vpop.f32.mrb[0].mxu0
        %1265 = vdwg.mxu0
        %v1266 = vadd.f32 %v1211, %v1260
        %v1267 = vadd.f32 %v1212, %v1263
        %1268 = vst [vmem:[#allocation2] sm:$0xff] %v1266
        %1269 = vst [vmem:[#allocation2 + $0x8] sm:$0xff] %v1267
        %p1270 = scmp.eq.s32.totalorder %s29, 2
        // Predicated region
        $region72: #{tpu_custom_call.1} parent=58 // pred_check
          %p1271 = pneg %p1270
        $region73: #{tpu_custom_call.1} parent=58 // pred_check_branch
          %1273 = sbr.rel (%p1271) target = $region75
        $region74: #{tpu_custom_call.1} parent=58 // pred_region
          %v1274 = vld [vmem:[#allocation2] sm:$0xff]
          %v1275 = vld [vmem:[#allocation2 + $0x8] sm:$0xff]
          %v1276 = vld [vmem:[%s465] sm:$0x1]
          %v1278 = vlaneseq
          %v1279 = vshrl.u32 %v1278, 7
          %v1280 = vsub.s32 0, %v1279
          %v1281 = vrot.slane %v1276, %v1280
          %v1283 = vadd.f32 %v1274, %v1281
          %v1284 = vadd.f32 %v1275, %v1281
          %1285 = vst [vmem:[%s438] sm:$0xff] %v1283
          %1286 = vst [vmem:[%s438 + $0x8] sm:$0xff] %v1284
        $region75: #{tpu_custom_call.1} parent=58 // pred_fallthru
          _
        %s1287 = sand.u32 %s189, 1
        %s1288 = scalar_lea.sflag [#allocation5], %s1287
        %s1289 = sand.u32 %s189, 1
        %s1290 = smul.addr %s1289, 16
        %s1291 = scalar_lea.vmem [#allocation7], %s1290
        // Predicated region
        $region76: #{tpu_custom_call.1} parent=58 // pred_check
          %p1292 = pneg %p199
        $region77: #{tpu_custom_call.1} parent=58 // pred_check_branch
          %1294 = sbr.rel (%p1292) target = $region79
        $region78: #{tpu_custom_call.1} parent=58 // pred_region
          %s1295 = smul.u32 2, %s27
          %s1297 = ssub.s32 256, 256
          %1298 = vsyncadd %s1288, %s1297
          %s1299 = smul.addr %s1295, 3
          %s1300 = sadd.s32 %s28, %s1299
          %s1301 = smul.addr %s1300, 128
          %s1302 = scalar_lea.hbm %s5, %s1301
          %s1303 = sshll.u32 %s1291, 4
          %s1304 = int_to_ptr.vmem [resolvable:$true] %s1303
          %1309 = dma.vmem_to_hbm [thread:$0]  %s1304, 256, %s1302, %s1288, 128, 384, 8
        $region79: #{tpu_custom_call.1} parent=58 // pred_fallthru
          _
      $region59: #{tpu_custom_call.1} parent=5 // pred_fallthru
        _
      %p1310 = scmp.le.s32.totalorder 2, %s17
      // Predicated region
      $region80: #{tpu_custom_call.1} parent=5 // pred_check
        %p1311 = pneg %p1310
      $region81: #{tpu_custom_call.1} parent=5 // pred_check_branch
        %1313 = sbr.rel (%p1311) target = $region83
      $region82: #{tpu_custom_call.1} parent=5 // pred_region
        %s1314 = ssub.s32 %s17, 2
        // Predicated region
        $region84: #{tpu_custom_call.1} parent=82 // pred_check
          %p1315 = pneg %p205
        $region85: #{tpu_custom_call.1} parent=82 // pred_check_branch
          %1317 = sbr.rel (%p1315) target = $region87
        $region86: #{tpu_custom_call.1} parent=82 // pred_region
          %s1318 = sand.u32 %s190, 1
          %s1319 = scalar_lea.sflag [#allocation5], %s1318
          %s1320 = sand.u32 %s190, 1
          %s1321 = smul.addr %s1320, 16
          %s1322 = scalar_lea.vmem [#allocation7], %s1321
          %1323 = dma.done %s1319, 256
        $region87: #{tpu_custom_call.1} parent=82 // pred_fallthru
          _
      $region83: #{tpu_custom_call.1} parent=5 // pred_fallthru
        _
    $region6: #{tpu_custom_call.1} parent=1 // loop_footer
      %s21 = sadd.s32 1, %s17
    $region7: #{tpu_custom_call.1} parent=1 // loop_footer_branch
      %16 = sbr.rel target = $region3
    $region8: #{tpu_custom_call.1} parent=1 // loop_exit
      _
    %1324 = vsyncpa [#allocation4], 1
    %s1325 = scalar_lea.sflag [#allocation4], 1
    %1326 = vsyncpa %s1325, 1
    %1327 = vsyncpa [#allocation5], 1
    %s1328 = scalar_lea.sflag [#allocation5], 1
    %1329 = vsyncpa %s1328, 1

</llo_original>
